<compile_context>
chip_gen: v6e
topology: v6e:2x2x1
jax: 0.10.0
libtpu: 0.0.40
codegen_flags: <defaults>
</compile_context>

<pallas_src>
import functools

import jax
import jax.numpy as jnp
from jax import lax
from jax.experimental import pallas as pl
from jax.experimental.pallas import tpu as pltpu


def residual_linear_attention_kernel(x_ref, wqkv_ref, wout_ref, bout_ref,
                                     mask_ref, o_ref, *, heads, dim_head):
    hidden = heads * dim_head
    x = x_ref[...]                                   # (C, N) f32 (kept for residual)

    # to_qkv: 1x1 conv, no bias == channel matmul at every spatial position.
    # wqkv_ref is the lane-dense transposed weight (C, 3*hidden), bf16.
    qkv = lax.dot_general(wqkv_ref[...], x.astype(jnp.bfloat16),
                          (((0,), (0,)), ((), ())),
                          preferred_element_type=jnp.float32)     # (3*hidden, N) f32
    q = qkv[0:hidden, :]
    k = qkv[hidden:2 * hidden, :]
    v = qkv[2 * hidden:3 * hidden, :]

    # Softmax over spatial positions (lane axis), normalization deferred; all
    # statistics in f32 (v5e VPU/EUP have no bf16 path anyway).
    k_max = jnp.max(k, axis=-1, keepdims=True)                    # (hidden, 1)
    k_exp = jnp.exp(k - k_max)                                    # (hidden, N) f32
    inv_sum = pl.reciprocal(jnp.sum(k_exp, axis=-1, keepdims=True),
                            approx=True)                          # (hidden, 1) f32

    # One batched context matmul across all heads (full 128-lane MXU tile, bf16
    # operands / f32 accumulate); only the block-diagonal blocks are meaningful.
    ctx = lax.dot_general(k_exp.astype(jnp.bfloat16), v.astype(jnp.bfloat16),
                          (((1,), (1,)), ((), ())),
                          preferred_element_type=jnp.float32)     # (hidden_d, hidden_e)

    # Deferred softmax normalization (row scale) + precomputed per-head
    # block-diagonal mask: two small (hidden x hidden) vmuls, no per-step iota.
    ctx = ctx * inv_sum * mask_ref[...]

    # out[e, n] = sum_d ctx[d, e] * q[d, n]   (all heads at once)
    out_all = lax.dot_general(ctx.astype(jnp.bfloat16), q.astype(jnp.bfloat16),
                              (((0,), (0,)), ((), ())),
                              preferred_element_type=jnp.float32)  # (hidden, N)

    # to_out: 1x1 conv with bias (wout is bf16, lane-dense), then the residual.
    y = jnp.dot(wout_ref[...], out_all.astype(jnp.bfloat16),
                preferred_element_type=jnp.float32)                # (C, N) f32
    o_ref[...] = (y + bout_ref[...] + x).astype(o_ref.dtype)


def residual_linear_attention(x, wqkv, wout, bout, *, heads, dim_head):
    """Residual(LinearAttention) forward.

    x: (B, C, H, W) NCHW.  wqkv: (3*heads*dim_head, C).  wout: (C, heads*dim_head).
    bout: (C,).  Returns (B, C, H, W) = attn(x) + x.
    """
    B, C, H, W = x.shape
    N = H * W
    hidden = heads * dim_head

    x_flat = x.reshape(B, C, N).astype(jnp.float32)
    wqkv_t = jnp.transpose(wqkv).astype(jnp.bfloat16)          # (C, 3*hidden), lane-dense
    wout_bf = wout.astype(jnp.bfloat16)                        # (C, hidden),  lane-dense
    bout2 = bout.reshape(C, 1).astype(jnp.float32)

    # Precomputed per-head block-diagonal mask (hidden, hidden), 0/1 f32.
    head_ids = jnp.arange(hidden, dtype=jnp.int32) // dim_head
    mask = (head_ids[:, None] == head_ids[None, :]).astype(jnp.float32)

    flops = 2 * B * N * (3 * hidden * C          # qkv projection
                         + hidden * hidden       # context matmul
                         + hidden * hidden       # context^T @ q
                         + C * hidden)           # output projection
    transcendentals = B * hidden * (N + 1)       # exp + reciprocal
    bytes_accessed = (4 * 2 * B * C * N                       # x in + out (f32)
                      + 2 * (3 * hidden * C + C * hidden)     # bf16 weights
                      + 4 * (C + hidden * hidden))            # bias + mask

    out = pl.pallas_call(
        functools.partial(residual_linear_attention_kernel,
                          heads=heads, dim_head=dim_head),
        out_shape=jax.ShapeDtypeStruct((B, C, N), jnp.float32),
        grid_spec=pltpu.PrefetchScalarGridSpec(
            num_scalar_prefetch=0,
            grid=(B,),
            in_specs=[
                pl.BlockSpec((pl.Squeezed(), C, N), lambda b: (b, 0, 0)),
                pl.BlockSpec((C, 3 * hidden), lambda b: (0, 0)),
                pl.BlockSpec((C, hidden), lambda b: (0, 0)),
                pl.BlockSpec((C, 1), lambda b: (0, 0)),
                pl.BlockSpec((hidden, hidden), lambda b: (0, 0)),
            ],
            out_specs=pl.BlockSpec((pl.Squeezed(), C, N), lambda b: (b, 0, 0)),
        ),
        compiler_params=pltpu.CompilerParams(
            dimension_semantics=("parallel",)),
        cost_estimate=pl.CostEstimate(flops=flops,
                                      transcendentals=transcendentals,
                                      bytes_accessed=bytes_accessed),
    )(x_flat, wqkv_t, wout_bf, bout2, mask)
    return out.reshape(B, C, H, W)


def residual_linear_attention_reference(x, wqkv, wout, bout, *, heads, dim_head):
    """Pure-JAX reference mirroring the PyTorch Residual(LinearAttention) forward."""
    B, C, H, W = x.shape
    N = H * W
    hidden = heads * dim_head
    xf = x.reshape(B, C, N)
    qkv = jnp.einsum('oc,bcn->bon', wqkv, xf)                  # 1x1 conv, no bias
    qkv = qkv.reshape(B, 3, heads, dim_head, N)
    q, k, v = qkv[:, 0], qkv[:, 1], qkv[:, 2]
    k = jax.nn.softmax(k, axis=-1)
    context = jnp.einsum('bhdn,bhen->bhde', k, v)
    out = jnp.einsum('bhde,bhdn->bhen', context, q)
    out = out.reshape(B, hidden, N)
    y = jnp.einsum('oc,bcn->bon', wout, out) + bout.reshape(1, C, 1)
    return y.reshape(B, C, H, W) + x                           # residual skip


if __name__ == "__main__":
    B, dim, H, W = 2, 4, 16, 16
    heads, dim_head = 4, 32
    hidden = heads * dim_head

    key = jax.random.PRNGKey(0)
    k_x, k_wqkv, k_wout, k_bout = jax.random.split(key, 4)

    x = jax.random.normal(k_x, (B, dim, H, W), dtype=jnp.float32)
    # nn.Conv2d weights (out, in, 1, 1) squeezed to (out, in); deterministic init.
    wqkv = 0.1 * jax.random.normal(k_wqkv, (3 * hidden, dim), dtype=jnp.float32)
    wout = 0.1 * jax.random.normal(k_wout, (dim, hidden), dtype=jnp.float32)
    bout = 0.1 * jax.random.normal(k_bout, (dim,), dtype=jnp.float32)

    y = residual_linear_attention(x, wqkv, wout, bout,
                                  heads=heads, dim_head=dim_head)
    y = jax.block_until_ready(y)

    y_ref = residual_linear_attention_reference(x, wqkv, wout, bout,
                                                heads=heads, dim_head=dim_head)
    assert y.shape == (B, dim, H, W)
    # tolerance accounts for bf16 MXU operands (f32 accumulation / f32 softmax
    # stats) and the approx (EUP) reciprocal in the softmax denominator.
    assert jnp.allclose(y, y_ref, atol=2e-2, rtol=2e-2)
    print("KERNEL_OK")
</pallas_src>

<mosaic_0001>
module attributes {stable_mosaic.version = 11 : i64} {
  func.func @residual_linear_attention_kernel(%arg0: i32, %arg1: memref<1x4x256xf32, #tpu.memory_space<vmem>>, %arg2: memref<4x384xbf16, #tpu.memory_space<vmem>>, %arg3: memref<4x128xbf16, #tpu.memory_space<vmem>>, %arg4: memref<4x1xf32, #tpu.memory_space<vmem>>, %arg5: memref<128x128xf32, #tpu.memory_space<vmem>>, %arg6: memref<1x4x256xf32, #tpu.memory_space<vmem>>) attributes {dimension_semantics = [#tpu.dimension_semantics<parallel>], iteration_bounds = array<i64: 2>, scalar_prefetch = 0 : i64, scratch_operands = 0 : i64, tpu.core_type = #tpu.core_type<tc>, window_params = [{transform_indices = @transform_0, window_bounds = array<i64: 1, 4, 256>}, {pipeline_mode = #tpu.pipeline_mode<synchronous>, transform_indices = @transform_1, window_bounds = array<i64: 4, 384>}, {pipeline_mode = #tpu.pipeline_mode<synchronous>, transform_indices = @transform_2, window_bounds = array<i64: 4, 128>}, {pipeline_mode = #tpu.pipeline_mode<synchronous>, transform_indices = @transform_3, window_bounds = array<i64: 4, 1>}, {pipeline_mode = #tpu.pipeline_mode<synchronous>, transform_indices = @transform_4, window_bounds = array<i64: 128, 128>}, {transform_indices = @transform_5, window_bounds = array<i64: 1, 4, 256>}]} {
    %c0 = arith.constant 0 : index
    %c0_0 = arith.constant 0 : index
    %c0_1 = arith.constant 0 : index
    %0 = vector.load %arg1[%c0, %c0_0, %c0_1] : memref<1x4x256xf32, #tpu.memory_space<vmem>>, vector<1x4x256xf32>
    %1 = vector.shape_cast %0 : vector<1x4x256xf32> to vector<4x256xf32>
    %c0_2 = arith.constant 0 : index
    %c0_3 = arith.constant 0 : index
    %2 = vector.load %arg2[%c0_2, %c0_3] : memref<4x384xbf16, #tpu.memory_space<vmem>>, vector<4x384xbf16>
    %3 = arith.truncf %1 : vector<4x256xf32> to vector<4x256xbf16>
    %cst = arith.constant dense<0.000000e+00> : vector<384x256xf32>
    %4 = tpu.matmul %2, %3, %cst {dimension_numbers = #tpu.dot_dimension_numbers<[0], [0], [1], [1], [0, 1, 1, 1], [], []>} : vector<4x384xbf16>, vector<4x256xbf16>, vector<384x256xf32> -> vector<384x256xf32>
    %5 = vector.extract_strided_slice %4 {offsets = [0, 0], sizes = [128, 256], strides = [1, 1]} : vector<384x256xf32> to vector<128x256xf32>
    %6 = vector.extract_strided_slice %4 {offsets = [128, 0], sizes = [128, 256], strides = [1, 1]} : vector<384x256xf32> to vector<128x256xf32>
    %7 = vector.extract_strided_slice %4 {offsets = [256, 0], sizes = [128, 256], strides = [1, 1]} : vector<384x256xf32> to vector<128x256xf32>
    %cst_4 = arith.constant dense<0xFF800000> : vector<128xf32>
    %8 = vector.multi_reduction <maximumf>, %6, %cst_4 [1] : vector<128x256xf32> to vector<128xf32>
    %9 = vector.shape_cast %8 : vector<128xf32> to vector<128x1xf32>
    %10 = vector.broadcast %9 : vector<128x1xf32> to vector<128x256xf32>
    %11 = arith.subf %6, %10 : vector<128x256xf32>
    %12 = math.exp %11 : vector<128x256xf32>
    %cst_5 = arith.constant dense<0.000000e+00> : vector<128xf32>
    %13 = vector.multi_reduction <add>, %12, %cst_5 [1] : vector<128x256xf32> to vector<128xf32>
    %14 = vector.shape_cast %13 : vector<128xf32> to vector<128x1xf32>
    %15 = tpu.reciprocal %14 {approx = true} : vector<128x1xf32> -> vector<128x1xf32>
    %16 = arith.truncf %12 : vector<128x256xf32> to vector<128x256xbf16>
    %17 = arith.truncf %7 : vector<128x256xf32> to vector<128x256xbf16>
    %cst_6 = arith.constant dense<0.000000e+00> : vector<128x128xf32>
    %18 = tpu.matmul %16, %17, %cst_6 {dimension_numbers = #tpu.dot_dimension_numbers<[1], [1], [0], [0], [0, 0, 1, 0], [], []>} : vector<128x256xbf16>, vector<128x256xbf16>, vector<128x128xf32> -> vector<128x128xf32>
    %19 = vector.broadcast %15 : vector<128x1xf32> to vector<128x128xf32>
    %20 = arith.mulf %18, %19 : vector<128x128xf32>
    %c0_7 = arith.constant 0 : index
    %c0_8 = arith.constant 0 : index
    %21 = vector.load %arg5[%c0_7, %c0_8] : memref<128x128xf32, #tpu.memory_space<vmem>>, vector<128x128xf32>
    %22 = arith.mulf %20, %21 : vector<128x128xf32>
    %23 = arith.truncf %22 : vector<128x128xf32> to vector<128x128xbf16>
    %24 = arith.truncf %5 : vector<128x256xf32> to vector<128x256xbf16>
    %cst_9 = arith.constant dense<0.000000e+00> : vector<128x256xf32>
    %25 = tpu.matmul %23, %24, %cst_9 {dimension_numbers = #tpu.dot_dimension_numbers<[0], [0], [1], [1], [0, 1, 1, 1], [], []>} : vector<128x128xbf16>, vector<128x256xbf16>, vector<128x256xf32> -> vector<128x256xf32>
    %c0_10 = arith.constant 0 : index
    %c0_11 = arith.constant 0 : index
    %26 = vector.load %arg3[%c0_10, %c0_11] : memref<4x128xbf16, #tpu.memory_space<vmem>>, vector<4x128xbf16>
    %27 = arith.truncf %25 : vector<128x256xf32> to vector<128x256xbf16>
    %cst_12 = arith.constant dense<0.000000e+00> : vector<4x256xf32>
    %28 = tpu.matmul %26, %27, %cst_12 {dimension_numbers = #tpu.dot_dimension_numbers<[1], [0], [0], [1], [0, 0, 1, 1], [], []>} : vector<4x128xbf16>, vector<128x256xbf16>, vector<4x256xf32> -> vector<4x256xf32>
    %c0_13 = arith.constant 0 : index
    %c0_14 = arith.constant 0 : index
    %29 = vector.load %arg4[%c0_13, %c0_14] : memref<4x1xf32, #tpu.memory_space<vmem>>, vector<4x1xf32>
    %30 = vector.broadcast %29 : vector<4x1xf32> to vector<4x256xf32>
    %31 = arith.addf %28, %30 : vector<4x256xf32>
    %32 = arith.addf %31, %1 : vector<4x256xf32>
    %c0_15 = arith.constant 0 : index
    %c0_16 = arith.constant 0 : index
    %c0_17 = arith.constant 0 : index
    %33 = vector.load %arg6[%c0_15, %c0_16, %c0_17] : memref<1x4x256xf32, #tpu.memory_space<vmem>>, vector<1x4x256xf32>
    %34 = vector.shape_cast %33 : vector<1x4x256xf32> to vector<4x256xf32>
    %35 = vector.shape_cast %32 : vector<4x256xf32> to vector<1x4x256xf32>
    tpu.vector_store %arg6[%c0_15, %c0_16, %c0_17], %35 {strides = array<i32>} : memref<1x4x256xf32, #tpu.memory_space<vmem>>, vector<1x4x256xf32>,
    return
  }
  func.func @transform_0(%arg0: i32) -> (i32, i32, i32) {
    %c0_i32 = arith.constant 0 : i32
    %c0_i32_0 = arith.constant 0 : i32
    %c0_i32_1 = arith.constant 0 : i32
    return %arg0, %c0_i32, %c0_i32_0 : i32, i32, i32
  }
  func.func @transform_1(%arg0: i32) -> (i32, i32) {
    %c0_i32 = arith.constant 0 : i32
    %c0_i32_0 = arith.constant 0 : i32
    %c0_i32_1 = arith.constant 0 : i32
    return %c0_i32, %c0_i32_0 : i32, i32
  }
  func.func @transform_2(%arg0: i32) -> (i32, i32) {
    %c0_i32 = arith.constant 0 : i32
    %c0_i32_0 = arith.constant 0 : i32
    %c0_i32_1 = arith.constant 0 : i32
    return %c0_i32, %c0_i32_0 : i32, i32
  }
  func.func @transform_3(%arg0: i32) -> (i32, i32) {
    %c0_i32 = arith.constant 0 : i32
    %c0_i32_0 = arith.constant 0 : i32
    %c0_i32_1 = arith.constant 0 : i32
    return %c0_i32, %c0_i32_0 : i32, i32
  }
  func.func @transform_4(%arg0: i32) -> (i32, i32) {
    %c0_i32 = arith.constant 0 : i32
    %c0_i32_0 = arith.constant 0 : i32
    %c0_i32_1 = arith.constant 0 : i32
    return %c0_i32, %c0_i32_0 : i32, i32
  }
  func.func @transform_5(%arg0: i32) -> (i32, i32, i32) {
    %c0_i32 = arith.constant 0 : i32
    %c0_i32_0 = arith.constant 0 : i32
    %c0_i32_1 = arith.constant 0 : i32
    return %arg0, %c0_i32, %c0_i32_0 : i32, i32, i32
  }
}

</mosaic_0001>

<llo_original>
// kernel: tpu_custom_call.1
$region0: #{tpu_custom_call.1}
  #allocation0 [shape = 'u32[]', space=smem, size = 0x4, offset = 0x4, fixed_abs, tag = 'smem constant byte address 0x4 - core index']
  #allocation1 [shape = 'u32[144,128]{1,0:T(1,128)}', space=vmem, size = 0x12000, scoped, tag = 'internal scratch']
  %s0 = inlined_call_operand.hbm [shape: f32[2,4,256], index: 0, kind: input, shape index: {}]
  %s1 = inlined_call_operand.vmem [shape: bf16[4,384], index: 1, kind: input, shape index: {}]
  %s2 = inlined_call_operand.vmem [shape: bf16[4,128], index: 2, kind: input, shape index: {}]
  %s3 = inlined_call_operand.vmem [shape: f32[4,1], index: 3, kind: input, shape index: {}]
  %s4 = inlined_call_operand.hbm [shape: f32[128,128], index: 4, kind: input, shape index: {}]
  %s5 = inlined_call_operand.hbm [shape: f32[2,4,256], index: 5, kind: output, shape index: {}]
  %s6 = sld [smem:[#allocation0]]
  $region61: #{tpu_custom_call.1} parent=0
    _
  %s8 = ssub.s32 1, %s6
  %s9 = scalar_select 0, %s8, %s6
  $region1: #{tpu_custom_call.1} parent=0
    #allocation2 [shape = 'u8[8192]{0}', space=vmem, size = 0x2000, scoped, tag = 'input window, operand 0']
    #allocation3 [shape = 's32[2]{0}', space=sflag, size = 0x8, scoped, tag = 'scoped memory for tpu_custom_call.1']
    #allocation4 [shape = 's32[2]{0}', space=sflag, size = 0x8, scoped, tag = 'scoped memory for tpu_custom_call.1']
    #allocation5 [shape = 'u8[65536]{0}', space=vmem, size = 0x10000, scoped, tag = 'input window, operand 4, single buffered']
    #allocation6 [shape = 's32[1]{0}', space=sflag, size = 0x4, scoped, tag = 'scoped memory for tpu_custom_call.1']
    #allocation7 [shape = 'u8[8192]{0}', space=vmem, size = 0x2000, scoped, tag = 'output window, operand 0']
    %10 = vsyncpa [#allocation3], 0
    %s11 = scalar_lea.sflag [#allocation3], 1
    %12 = vsyncpa %s11, 0
    %13 = vsyncpa [#allocation6], 0
    %14 = vsyncpa [#allocation4], 0
    %s15 = scalar_lea.sflag [#allocation4], 1
    %16 = vsyncpa %s15, 0
    loop: start=0, step=1, limit=4
    $region2: #{tpu_custom_call.1} parent=1 // loop_pre_header
      _
    $region3: #{tpu_custom_call.1} parent=1 // loop_header
      %s18 = sphi 0, %s22
      %p19 = scmp.ge.s32.totalorder %s18, 4
      %s28 = sphi 0, %s30
      %s31 = sphi 0, %s28
      %s32 = sphi 0, %s31
      %s48 = sphi 0, %s32
      %s52 = sphi 0, %s52
      %s54 = sphi 0, %s52
      %s55 = sphi 0, %s54
      %s69 = sphi 0, %s55
      %s73 = sphi 0, %s73
      %s75 = sphi 0, %s73
      %s76 = sphi 0, %s75
      %s90 = sphi 0, %s76
      %s94 = sphi 0, %s94
      %s96 = sphi 0, %s94
      %s97 = sphi 0, %s96
      %s111 = sphi 0, %s97
      %s115 = sphi 0, %s115
      %s117 = sphi 0, %s115
      %s118 = sphi 0, %s117
      %s132 = sphi 0, %s118
      %s138 = sphi 0, %s140
      %s141 = sphi 0, %s138
      %s142 = sphi 0, %s141
      %s158 = sphi 0, %s142
    $region4: #{tpu_custom_call.1} parent=1 // loop_header_branch
      %21 = sbr.rel (%p19) target = $region8
    $region5: #{tpu_custom_call.1} parent=1 // loop_body
      %s23 = ssub.s32 %s18, 1
      %s24 = ssub.s32 %s18, 2
      %s25 = sadd.s32 %s18, 1
      %s26 = ssub.s32 %s18, %s25
      %p27 = scmp.eq.s32.totalorder %s26, 0
      %s29 = sadd.s32 %s28, 1
      %s30 = scalar_select %p27, %s28, %s29
      %p33 = pneg %p27
      %p34 = scmp.eq.s32.totalorder %s18, 1
      %p35 = por %p33, %p34
      %p36 = scmp.ne.s32.totalorder %s28, %s31
      %p37 = scmp.eq.s32.totalorder %s18, 0
      %p38 = por %p36, %p37
      %p39 = scmp.ne.s32.totalorder %s28, %s31
      %p40 = scmp.eq.s32.totalorder %s23, 1
      %p41 = por %p39, %p40
      %p42 = scmp.ne.s32.totalorder %s31, %s32
      %p43 = scmp.eq.s32.totalorder %s23, 0
      %p44 = por %p42, %p43
      %p45 = scmp.ne.s32.totalorder %s31, %s32
      %p46 = scmp.eq.s32.totalorder %s24, 1
      %p47 = por %p45, %p46
      %p49 = scmp.ne.s32.totalorder %s32, %s48
      %p50 = scmp.eq.s32.totalorder %s24, 0
      %p51 = por %p49, %p50
      %s53 = sadd.s32 %s52, 1
      %p56 = scmp.eq.s32.totalorder %s18, 1
      %p57 = scmp.ne.s32.totalorder %s52, %s54
      %p58 = scmp.eq.s32.totalorder %s18, 0
      %p59 = por %p57, %p58
      %p60 = scmp.ne.s32.totalorder %s52, %s54
      %p61 = scmp.eq.s32.totalorder %s23, 1
      %p62 = por %p60, %p61
      %p63 = scmp.ne.s32.totalorder %s54, %s55
      %p64 = scmp.eq.s32.totalorder %s23, 0
      %p65 = por %p63, %p64
      %p66 = scmp.ne.s32.totalorder %s54, %s55
      %p67 = scmp.eq.s32.totalorder %s24, 1
      %p68 = por %p66, %p67
      %p70 = scmp.ne.s32.totalorder %s55, %s69
      %p71 = scmp.eq.s32.totalorder %s24, 0
      %p72 = por %p70, %p71
      %s74 = sadd.s32 %s73, 1
      %p77 = scmp.eq.s32.totalorder %s18, 1
      %p78 = scmp.ne.s32.totalorder %s73, %s75
      %p79 = scmp.eq.s32.totalorder %s18, 0
      %p80 = por %p78, %p79
      %p81 = scmp.ne.s32.totalorder %s73, %s75
      %p82 = scmp.eq.s32.totalorder %s23, 1
      %p83 = por %p81, %p82
      %p84 = scmp.ne.s32.totalorder %s75, %s76
      %p85 = scmp.eq.s32.totalorder %s23, 0
      %p86 = por %p84, %p85
      %p87 = scmp.ne.s32.totalorder %s75, %s76
      %p88 = scmp.eq.s32.totalorder %s24, 1
      %p89 = por %p87, %p88
      %p91 = scmp.ne.s32.totalorder %s76, %s90
      %p92 = scmp.eq.s32.totalorder %s24, 0
      %p93 = por %p91, %p92
      %s95 = sadd.s32 %s94, 1
      %p98 = scmp.eq.s32.totalorder %s18, 1
      %p99 = scmp.ne.s32.totalorder %s94, %s96
      %p100 = scmp.eq.s32.totalorder %s18, 0
      %p101 = por %p99, %p100
      %p102 = scmp.ne.s32.totalorder %s94, %s96
      %p103 = scmp.eq.s32.totalorder %s23, 1
      %p104 = por %p102, %p103
      %p105 = scmp.ne.s32.totalorder %s96, %s97
      %p106 = scmp.eq.s32.totalorder %s23, 0
      %p107 = por %p105, %p106
      %p108 = scmp.ne.s32.totalorder %s96, %s97
      %p109 = scmp.eq.s32.totalorder %s24, 1
      %p110 = por %p108, %p109
      %p112 = scmp.ne.s32.totalorder %s97, %s111
      %p113 = scmp.eq.s32.totalorder %s24, 0
      %p114 = por %p112, %p113
      %s116 = sadd.s32 %s115, 1
      %p119 = scmp.eq.s32.totalorder %s18, 1
      %p120 = scmp.ne.s32.totalorder %s115, %s117
      %p121 = scmp.eq.s32.totalorder %s18, 0
      %p122 = por %p120, %p121
      %p123 = scmp.ne.s32.totalorder %s115, %s117
      %p124 = scmp.eq.s32.totalorder %s23, 1
      %p125 = por %p123, %p124
      %p126 = scmp.ne.s32.totalorder %s117, %s118
      %p127 = scmp.eq.s32.totalorder %s23, 0
      %p128 = por %p126, %p127
      %p129 = scmp.ne.s32.totalorder %s117, %s118
      %p130 = scmp.eq.s32.totalorder %s24, 1
      %p131 = por %p129, %p130
      %p133 = scmp.ne.s32.totalorder %s118, %s132
      %p134 = scmp.eq.s32.totalorder %s24, 0
      %p135 = por %p133, %p134
      %s136 = ssub.s32 %s18, %s25
      %p137 = scmp.eq.s32.totalorder %s136, 0
      %s139 = sadd.s32 %s138, 1
      %s140 = scalar_select %p137, %s138, %s139
      %p143 = pneg %p137
      %p144 = scmp.eq.s32.totalorder %s18, 1
      %p145 = por %p143, %p144
      %p146 = scmp.ne.s32.totalorder %s138, %s141
      %p147 = scmp.eq.s32.totalorder %s18, 0
      %p148 = por %p146, %p147
      %p149 = scmp.ne.s32.totalorder %s138, %s141
      %p150 = scmp.eq.s32.totalorder %s23, 1
      %p151 = por %p149, %p150
      %p152 = scmp.ne.s32.totalorder %s141, %s142
      %p153 = scmp.eq.s32.totalorder %s23, 0
      %p154 = por %p152, %p153
      %p155 = scmp.ne.s32.totalorder %s141, %s142
      %p156 = scmp.eq.s32.totalorder %s24, 1
      %p157 = por %p155, %p156
      %p159 = scmp.ne.s32.totalorder %s142, %s158
      %p160 = scmp.eq.s32.totalorder %s24, 0
      %p161 = por %p159, %p160
      %p162 = scmp.le.s32.totalorder 1, %s18
      %p163 = scmp.lt.s32.totalorder %s18, 3
      %p164 = pnand %p162, %p163
      %p165 = pneg %p164
      // Predicated region
      $region9: #{tpu_custom_call.1} parent=5 // pred_check
        _
      $region10: #{tpu_custom_call.1} parent=5 // pred_check_branch
        %167 = sbr.rel (%p164) target = $region12
      $region11: #{tpu_custom_call.1} parent=5 // pred_region
        %s168 = ssub.s32 %s18, 1
        // Predicated region
        $region13: #{tpu_custom_call.1} parent=11 // pred_check
          %p169 = pneg %p65
        $region14: #{tpu_custom_call.1} parent=11 // pred_check_branch
          %171 = sbr.rel (%p169) target = $region16
        $region15: #{tpu_custom_call.1} parent=11 // pred_region
          _
        $region16: #{tpu_custom_call.1} parent=11 // pred_fallthru
          _
        // Predicated region
        $region17: #{tpu_custom_call.1} parent=11 // pred_check
          %p172 = pneg %p86
        $region18: #{tpu_custom_call.1} parent=11 // pred_check_branch
          %174 = sbr.rel (%p172) target = $region20
        $region19: #{tpu_custom_call.1} parent=11 // pred_region
          _
        $region20: #{tpu_custom_call.1} parent=11 // pred_fallthru
          _
        // Predicated region
        $region21: #{tpu_custom_call.1} parent=11 // pred_check
          %p175 = pneg %p107
        $region22: #{tpu_custom_call.1} parent=11 // pred_check_branch
          %177 = sbr.rel (%p175) target = $region24
        $region23: #{tpu_custom_call.1} parent=11 // pred_region
          _
        $region24: #{tpu_custom_call.1} parent=11 // pred_fallthru
          _
        // Predicated region
        $region25: #{tpu_custom_call.1} parent=11 // pred_check
          %p178 = pneg %p128
        $region26: #{tpu_custom_call.1} parent=11 // pred_check_branch
          %180 = sbr.rel (%p178) target = $region28
        $region27: #{tpu_custom_call.1} parent=11 // pred_region
          %s182 = ssub.s32 2048, 2048
          %183 = vsyncadd [#allocation6], %s182
          %s184 = sshll.u32 [#allocation5], 4
          %s185 = int_to_ptr.vmem [resolvable:$true] %s184
          %190 = dma.hbm_to_vmem [thread:$0]  %s4, 2048, %s185, [#allocation6], 128, 128, 8
        $region28: #{tpu_custom_call.1} parent=11 // pred_fallthru
          _
      $region12: #{tpu_custom_call.1} parent=5 // pred_fallthru
        _
      %p191 = scmp.lt.s32.totalorder %s18, 2
      // Predicated region
      $region29: #{tpu_custom_call.1} parent=5 // pred_check
        %p192 = pneg %p191
      $region30: #{tpu_custom_call.1} parent=5 // pred_check_branch
        %194 = sbr.rel (%p192) target = $region32
      $region31: #{tpu_custom_call.1} parent=5 // pred_region
        // Predicated region
        $region33: #{tpu_custom_call.1} parent=31 // pred_check
          %p195 = pneg %p38
        $region34: #{tpu_custom_call.1} parent=31 // pred_check_branch
          %197 = sbr.rel (%p195) target = $region36
        $region35: #{tpu_custom_call.1} parent=31 // pred_region
          %s198 = sand.u32 %s28, 1
          %s199 = scalar_lea.sflag [#allocation3], %s198
          %s200 = sand.u32 %s28, 1
          %s201 = smul.addr %s200, 8
          %s202 = scalar_lea.vmem [#allocation2], %s201
          %s204 = ssub.s32 128, 128
          %205 = vsyncadd %s199, %s204
          %s206 = smul.addr %s18, 2
          %s207 = smul.addr %s206, 64
          %s208 = scalar_lea.hbm %s0, %s207
          %s210 = sshll.u32 %s202, 4
          %s211 = int_to_ptr.vmem [resolvable:$true] %s210
          %213 = dma.hbm_to_vmem [thread:$0]  %s208, 128, %s211, %s199
        $region36: #{tpu_custom_call.1} parent=31 // pred_fallthru
          _
      $region32: #{tpu_custom_call.1} parent=5 // pred_fallthru
        _
      %p214 = scmp.le.s32.totalorder 1, %s18
      %p215 = scmp.lt.s32.totalorder %s18, 3
      %p216 = pnand %p214, %p215
      %p217 = pneg %p216
      // Predicated region
      $region37: #{tpu_custom_call.1} parent=5 // pred_check
        _
      $region38: #{tpu_custom_call.1} parent=5 // pred_check_branch
        %219 = sbr.rel (%p216) target = $region40
      $region39: #{tpu_custom_call.1} parent=5 // pred_region
        %s220 = ssub.s32 %s18, 1
        %s221 = sand.u32 %s31, 1
        %s222 = scalar_lea.sflag [#allocation3], %s221
        %s223 = sand.u32 %s31, 1
        %s224 = smul.addr %s223, 8
        %s225 = scalar_lea.vmem [#allocation2], %s224
        // Predicated region
        $region41: #{tpu_custom_call.1} parent=39 // pred_check
          %p226 = pneg %p44
        $region42: #{tpu_custom_call.1} parent=39 // pred_check_branch
          %228 = sbr.rel (%p226) target = $region44
        $region43: #{tpu_custom_call.1} parent=39 // pred_region
          %229 = dma.done %s222, 128
        $region44: #{tpu_custom_call.1} parent=39 // pred_fallthru
          _
        // Predicated region
        $region45: #{tpu_custom_call.1} parent=39 // pred_check
          %p230 = pneg %p128
        $region46: #{tpu_custom_call.1} parent=39 // pred_check_branch
          %232 = sbr.rel (%p230) target = $region48
        $region47: #{tpu_custom_call.1} parent=39 // pred_region
          %233 = dma.done [#allocation6], 2048
        $region48: #{tpu_custom_call.1} parent=39 // pred_fallthru
          _
        %s234 = sand.u32 %s31, 1
        %s235 = scalar_lea.sflag [#allocation3], %s234
        %s236 = sand.u32 %s31, 1
        %s237 = smul.addr %s236, 8
        %s238 = scalar_lea.vmem [#allocation2], %s237
        %p239 = pneg %p44
        %p240 = pneg %p41
        %p241 = pneg %p65
        %p242 = pneg %p62
        %p243 = pneg %p86
        %p244 = pneg %p83
        %p245 = pneg %p107
        %p246 = pneg %p104
        %p247 = pneg %p128
        %p248 = pneg %p125
        %p249 = pneg %p154
        %p250 = pneg %p151
        %s251 = sand.u32 %s141, 1
        %s252 = scalar_lea.sflag [#allocation4], %s251
        %s253 = sand.u32 %s141, 1
        %s254 = smul.addr %s253, 8
        %s255 = scalar_lea.vmem [#allocation7], %s254
        %v257 = vld [vmem:[%s225] sm:$0xff]
        %v258 = vld [vmem:[%s1] sm:$0x3f]
        %v260 = vcombine.high %v257, %v257
        %v262 = vpack.c.bf16 %v257, %v257
        %v263 = vpack.c.bf16 %v260, %v260
        %v265 = vcombine.high %v258, %v258
        %v267 = vunpack.c.l.s4 1983009808
        %v268 = vunpack.c.0.s8 %v267
        %v269 = vlaneseq
        %v270 = vshrl.u32 %v269, 7
        %v271 = vsub.s32 %v268, %v270
        %v272 = vrot.slane %v258, %v271
        %v274 = vunpack.c.l.s4 1983009808
        %v275 = vunpack.c.0.s8 %v274
        %v276 = vlaneseq
        %v277 = vshrl.u32 %v276, 7
        %v278 = vsub.s32 %v275, %v277
        %v279 = vrot.slane %v265, %v278
        %v280 = vcombine.high %v272, %v272
        %284 = vxpose.xlu0.c.b16.start [1/8] %v272, 128
        %285 = vxpose.xlu0.c.b16.cont [2/8] 0, 128
        %286 = vxpose.xlu0.c.b16.cont [3/8] 0, 128
        %287 = vxpose.xlu0.c.b16.cont [4/8] 0, 128
        %288 = vxpose.xlu0.c.b16.cont [5/8] 0, 128
        %289 = vxpose.xlu0.c.b16.cont [6/8] 0, 128
        %290 = vxpose.xlu0.c.b16.cont [7/8] 0, 128
        %291 = vxpose.xlu0.c.b16.end [8/8] 0, 128
        %v292 = vpop.trf.xlu0
        %v293 = vpop.trf.xlu0
        %v294 = vpop.trf.xlu0
        %v295 = vpop.trf.xlu0
        %v296 = vpop.trf.xlu0
        %v297 = vpop.trf.xlu0
        %v298 = vpop.trf.xlu0
        %v299 = vpop.trf.xlu0
        %300 = vxpose.xlu0.c.b16.start [1/8] %v280, 128
        %301 = vxpose.xlu0.c.b16.cont [2/8] 0, 128
        %302 = vxpose.xlu0.c.b16.cont [3/8] 0, 128
        %303 = vxpose.xlu0.c.b16.cont [4/8] 0, 128
        %304 = vxpose.xlu0.c.b16.cont [5/8] 0, 128
        %305 = vxpose.xlu0.c.b16.cont [6/8] 0, 128
        %306 = vxpose.xlu0.c.b16.cont [7/8] 0, 128
        %307 = vxpose.xlu0.c.b16.end [8/8] 0, 128
        %v308 = vpop.trf.xlu0
        %v309 = vpop.trf.xlu0
        %v310 = vpop.trf.xlu0
        %v311 = vpop.trf.xlu0
        %v312 = vpop.trf.xlu0
        %v313 = vpop.trf.xlu0
        %v314 = vpop.trf.xlu0
        %v315 = vpop.trf.xlu0
        %316 = vxpose.xlu0.c.b16.start [1/8] %v279, 128
        %317 = vxpose.xlu0.c.b16.cont [2/8] 0, 128
        %318 = vxpose.xlu0.c.b16.cont [3/8] 0, 128
        %319 = vxpose.xlu0.c.b16.cont [4/8] 0, 128
        %320 = vxpose.xlu0.c.b16.cont [5/8] 0, 128
        %321 = vxpose.xlu0.c.b16.cont [6/8] 0, 128
        %322 = vxpose.xlu0.c.b16.cont [7/8] 0, 128
        %323 = vxpose.xlu0.c.b16.end [8/8] 0, 128
        %v324 = vpop.trf.xlu0
        %v325 = vpop.trf.xlu0
        %v326 = vpop.trf.xlu0
        %v327 = vpop.trf.xlu0
        %v328 = vpop.trf.xlu0
        %v329 = vpop.trf.xlu0
        %v330 = vpop.trf.xlu0
        %v331 = vpop.trf.xlu0
        %vm332 = vcmask 31744
        %v334 = vsel %vm332, %v292, 0
        %v337 = vsel %vm332, %v293, 0
        %v340 = vsel %vm332, %v294, 0
        %v343 = vsel %vm332, %v295, 0
        %v346 = vsel %vm332, %v296, 0
        %v349 = vsel %vm332, %v297, 0
        %v352 = vsel %vm332, %v298, 0
        %v355 = vsel %vm332, %v299, 0
        %v358 = vsel %vm332, %v308, 0
        %v361 = vsel %vm332, %v309, 0
        %v364 = vsel %vm332, %v310, 0
        %v367 = vsel %vm332, %v311, 0
        %v370 = vsel %vm332, %v312, 0
        %v373 = vsel %vm332, %v313, 0
        %v376 = vsel %vm332, %v314, 0
        %v379 = vsel %vm332, %v315, 0
        %v382 = vsel %vm332, %v324, 0
        %v385 = vsel %vm332, %v325, 0
        %v388 = vsel %vm332, %v326, 0
        %v391 = vsel %vm332, %v327, 0
        %v394 = vsel %vm332, %v328, 0
        %v397 = vsel %vm332, %v329, 0
        %v400 = vsel %vm332, %v330, 0
        %v403 = vsel %vm332, %v331, 0
        %vm405 = vcmask 1041408
        %v407 = vsel %vm405, %v262, 0
        %v410 = vsel %vm405, %v263, 0
        %412 = vmatprep.subr.bf16.mxu0 0
        %413 = vmatpush1.bf16.msra.mxu0 0
        %414 = vmatprep.subr.bf16.mxu0 0
        %415 = vmatpush1.bf16.msra.mxu0 0
        %416 = vmatprep.subr.bf16.mxu0 0
        %417 = vmatpush1.bf16.msra.mxu0 0
        %418 = vmatprep.subr.bf16.mxu0 0
        %419 = vmatpush1.bf16.msra.mxu0 0
        %420 = vmatprep.subr.bf16.mxu0 0
        %421 = vmatpush1.bf16.msra.mxu0 0
        %422 = vmatprep.subr.bf16.mxu0 0
        %423 = vmatpush1.bf16.msra.mxu0 0
        %424 = vmatprep.subr.bf16.mxu0 0
        %425 = vmatpush1.bf16.msra.mxu0 0
        %426 = vmatprep.subr.bf16.mxu0 %v410
        %427 = vmatpush1.bf16.msra.mxu0 %v407
        %428 = vmatprep.subr.bf16.mxu0 0
        %429 = vmatpush2.bf16.msra.mxu0 0
        %430 = vmatprep.subr.bf16.mxu0 0
        %431 = vmatpush2.bf16.msra.mxu0 0
        %432 = vmatprep.subr.bf16.mxu0 0
        %433 = vmatpush2.bf16.msra.mxu0 0
        %434 = vmatprep.subr.bf16.mxu0 0
        %435 = vmatpush2.bf16.msra.mxu0 0
        %436 = vmatprep.subr.bf16.mxu0 0
        %437 = vmatpush2.bf16.msra.mxu0 0
        %438 = vmatprep.subr.bf16.mxu0 0
        %439 = vmatpush2.bf16.msra.mxu0 0
        %440 = vmatprep.subr.bf16.mxu0 0
        %441 = vmatpush2.bf16.msra.mxu0 0
        %442 = vmatprep.subr.bf16.mxu0 0
        %443 = vmatpush2.bf16.msra.mxu0 0
        %444 = vmatprep.mubr.bf16.mxu0 0
        %445 = vmatmul.mubr.bf16.gmra.mxu0 %v334
        %v446 = vpop.f32.mrf.mxu0
        %v447 = vadd.f32 0.0, %v446
        %v448 = vpop.f32.mrf.mxu0
        %v449 = vadd.f32 0.0, %v448
        %v450 = vpop.f32.mrf.mxu0
        %v451 = vadd.f32 0.0, %v450
        %v452 = vpop.f32.mrf.mxu0
        %v453 = vadd.f32 0.0, %v452
        %454 = vmatprep.mubr.bf16.mxu0 0
        %455 = vmatmul.mubr.bf16.gmra.mxu0 %v337
        %v456 = vpop.f32.mrf.mxu0
        %v457 = vadd.f32 0.0, %v456
        %v458 = vpop.f32.mrf.mxu0
        %v459 = vadd.f32 0.0, %v458
        %v460 = vpop.f32.mrf.mxu0
        %v461 = vadd.f32 0.0, %v460
        %v462 = vpop.f32.mrf.mxu0
        %v463 = vadd.f32 0.0, %v462
        %464 = vmatprep.mubr.bf16.mxu0 0
        %465 = vmatmul.mubr.bf16.gmra.mxu0 %v340
        %v466 = vpop.f32.mrf.mxu0
        %v467 = vadd.f32 0.0, %v466
        %v468 = vpop.f32.mrf.mxu0
        %v469 = vadd.f32 0.0, %v468
        %v470 = vpop.f32.mrf.mxu0
        %v471 = vadd.f32 0.0, %v470
        %v472 = vpop.f32.mrf.mxu0
        %v473 = vadd.f32 0.0, %v472
        %474 = vmatprep.mubr.bf16.mxu0 0
        %475 = vmatmul.mubr.bf16.gmra.mxu0 %v343
        %v476 = vpop.f32.mrf.mxu0
        %v477 = vadd.f32 0.0, %v476
        %v478 = vpop.f32.mrf.mxu0
        %v479 = vadd.f32 0.0, %v478
        %v480 = vpop.f32.mrf.mxu0
        %v481 = vadd.f32 0.0, %v480
        %v482 = vpop.f32.mrf.mxu0
        %v483 = vadd.f32 0.0, %v482
        %484 = vmatprep.mubr.bf16.mxu0 0
        %485 = vmatmul.mubr.bf16.gmra.mxu0 %v346
        %v486 = vpop.f32.mrf.mxu0
        %v487 = vadd.f32 0.0, %v486
        %v488 = vpop.f32.mrf.mxu0
        %v489 = vadd.f32 0.0, %v488
        %v490 = vpop.f32.mrf.mxu0
        %v491 = vadd.f32 0.0, %v490
        %v492 = vpop.f32.mrf.mxu0
        %v493 = vadd.f32 0.0, %v492
        %494 = vmatprep.mubr.bf16.mxu0 0
        %495 = vmatmul.mubr.bf16.gmra.mxu0 %v349
        %v496 = vpop.f32.mrf.mxu0
        %v497 = vadd.f32 0.0, %v496
        %v498 = vpop.f32.mrf.mxu0
        %v499 = vadd.f32 0.0, %v498
        %v500 = vpop.f32.mrf.mxu0
        %v501 = vadd.f32 0.0, %v500
        %v502 = vpop.f32.mrf.mxu0
        %v503 = vadd.f32 0.0, %v502
        %504 = vmatprep.mubr.bf16.mxu0 0
        %505 = vmatmul.mubr.bf16.gmra.mxu0 %v352
        %v506 = vpop.f32.mrf.mxu0
        %v507 = vadd.f32 0.0, %v506
        %v508 = vpop.f32.mrf.mxu0
        %v509 = vadd.f32 0.0, %v508
        %v510 = vpop.f32.mrf.mxu0
        %v511 = vadd.f32 0.0, %v510
        %v512 = vpop.f32.mrf.mxu0
        %v513 = vadd.f32 0.0, %v512
        %514 = vmatprep.mubr.bf16.mxu0 0
        %515 = vmatmul.mubr.bf16.gmra.mxu0 %v355
        %v516 = vpop.f32.mrf.mxu0
        %v517 = vadd.f32 0.0, %v516
        %v518 = vpop.f32.mrf.mxu0
        %v519 = vadd.f32 0.0, %v518
        %v520 = vpop.f32.mrf.mxu0
        %v521 = vadd.f32 0.0, %v520
        %v522 = vpop.f32.mrf.mxu0
        %v523 = vadd.f32 0.0, %v522
        %524 = vmatprep.mubr.bf16.mxu0 0
        %525 = vmatmul.mubr.bf16.gmra.mxu0 %v358
        %v526 = vpop.f32.mrf.mxu0
        %v527 = vadd.f32 0.0, %v526
        %v528 = vpop.f32.mrf.mxu0
        %v529 = vadd.f32 0.0, %v528
        %v530 = vpop.f32.mrf.mxu0
        %v531 = vadd.f32 0.0, %v530
        %v532 = vpop.f32.mrf.mxu0
        %v533 = vadd.f32 0.0, %v532
        %534 = vmatprep.mubr.bf16.mxu0 0
        %535 = vmatmul.mubr.bf16.gmra.mxu0 %v361
        %v536 = vpop.f32.mrf.mxu0
        %v537 = vadd.f32 0.0, %v536
        %v538 = vpop.f32.mrf.mxu0
        %v539 = vadd.f32 0.0, %v538
        %v540 = vpop.f32.mrf.mxu0
        %v541 = vadd.f32 0.0, %v540
        %v542 = vpop.f32.mrf.mxu0
        %v543 = vadd.f32 0.0, %v542
        %544 = vmatprep.mubr.bf16.mxu0 0
        %545 = vmatmul.mubr.bf16.gmra.mxu0 %v364
        %v546 = vpop.f32.mrf.mxu0
        %v547 = vadd.f32 0.0, %v546
        %v548 = vpop.f32.mrf.mxu0
        %v549 = vadd.f32 0.0, %v548
        %v550 = vpop.f32.mrf.mxu0
        %v551 = vadd.f32 0.0, %v550
        %v552 = vpop.f32.mrf.mxu0
        %v553 = vadd.f32 0.0, %v552
        %554 = vmatprep.mubr.bf16.mxu0 0
        %555 = vmatmul.mubr.bf16.gmra.mxu0 %v367
        %v556 = vpop.f32.mrf.mxu0
        %v557 = vadd.f32 0.0, %v556
        %v558 = vpop.f32.mrf.mxu0
        %v559 = vadd.f32 0.0, %v558
        %v560 = vpop.f32.mrf.mxu0
        %v561 = vadd.f32 0.0, %v560
        %v562 = vpop.f32.mrf.mxu0
        %v563 = vadd.f32 0.0, %v562
        %564 = vmatprep.mubr.bf16.mxu0 0
        %565 = vmatmul.mubr.bf16.gmra.mxu0 %v370
        %v566 = vpop.f32.mrf.mxu0
        %v567 = vadd.f32 0.0, %v566
        %v568 = vpop.f32.mrf.mxu0
        %v569 = vadd.f32 0.0, %v568
        %v570 = vpop.f32.mrf.mxu0
        %v571 = vadd.f32 0.0, %v570
        %v572 = vpop.f32.mrf.mxu0
        %v573 = vadd.f32 0.0, %v572
        %574 = vmatprep.mubr.bf16.mxu0 0
        %575 = vmatmul.mubr.bf16.gmra.mxu0 %v373
        %v576 = vpop.f32.mrf.mxu0
        %v577 = vadd.f32 0.0, %v576
        %v578 = vpop.f32.mrf.mxu0
        %v579 = vadd.f32 0.0, %v578
        %v580 = vpop.f32.mrf.mxu0
        %v581 = vadd.f32 0.0, %v580
        %v582 = vpop.f32.mrf.mxu0
        %v583 = vadd.f32 0.0, %v582
        %584 = vmatprep.mubr.bf16.mxu0 0
        %585 = vmatmul.mubr.bf16.gmra.mxu0 %v376
        %v586 = vpop.f32.mrf.mxu0
        %v587 = vadd.f32 0.0, %v586
        %v588 = vpop.f32.mrf.mxu0
        %v589 = vadd.f32 0.0, %v588
        %v590 = vpop.f32.mrf.mxu0
        %v591 = vadd.f32 0.0, %v590
        %v592 = vpop.f32.mrf.mxu0
        %v593 = vadd.f32 0.0, %v592
        %594 = vmatprep.mubr.bf16.mxu0 0
        %595 = vmatmul.mubr.bf16.gmra.mxu0 %v379
        %v596 = vpop.f32.mrf.mxu0
        %v597 = vadd.f32 0.0, %v596
        %v598 = vpop.f32.mrf.mxu0
        %v599 = vadd.f32 0.0, %v598
        %v600 = vpop.f32.mrf.mxu0
        %v601 = vadd.f32 0.0, %v600
        %v602 = vpop.f32.mrf.mxu0
        %v603 = vadd.f32 0.0, %v602
        %604 = vmatprep.mubr.bf16.mxu0 0
        %605 = vmatmul.mubr.bf16.gmra.mxu0 %v382
        %v606 = vpop.f32.mrf.mxu0
        %v607 = vadd.f32 0.0, %v606
        %v608 = vpop.f32.mrf.mxu0
        %v609 = vadd.f32 0.0, %v608
        %v610 = vpop.f32.mrf.mxu0
        %v611 = vadd.f32 0.0, %v610
        %v612 = vpop.f32.mrf.mxu0
        %v613 = vadd.f32 0.0, %v612
        %614 = vmatprep.mubr.bf16.mxu0 0
        %615 = vmatmul.mubr.bf16.gmra.mxu0 %v385
        %v616 = vpop.f32.mrf.mxu0
        %v617 = vadd.f32 0.0, %v616
        %v618 = vpop.f32.mrf.mxu0
        %v619 = vadd.f32 0.0, %v618
        %v620 = vpop.f32.mrf.mxu0
        %v621 = vadd.f32 0.0, %v620
        %v622 = vpop.f32.mrf.mxu0
        %v623 = vadd.f32 0.0, %v622
        %624 = vmatprep.mubr.bf16.mxu0 0
        %625 = vmatmul.mubr.bf16.gmra.mxu0 %v388
        %v626 = vpop.f32.mrf.mxu0
        %v627 = vadd.f32 0.0, %v626
        %v628 = vpop.f32.mrf.mxu0
        %v629 = vadd.f32 0.0, %v628
        %v630 = vpop.f32.mrf.mxu0
        %v631 = vadd.f32 0.0, %v630
        %v632 = vpop.f32.mrf.mxu0
        %v633 = vadd.f32 0.0, %v632
        %634 = vmatprep.mubr.bf16.mxu0 0
        %635 = vmatmul.mubr.bf16.gmra.mxu0 %v391
        %v636 = vpop.f32.mrf.mxu0
        %v637 = vadd.f32 0.0, %v636
        %v638 = vpop.f32.mrf.mxu0
        %v639 = vadd.f32 0.0, %v638
        %v640 = vpop.f32.mrf.mxu0
        %v641 = vadd.f32 0.0, %v640
        %v642 = vpop.f32.mrf.mxu0
        %v643 = vadd.f32 0.0, %v642
        %644 = vmatprep.mubr.bf16.mxu0 0
        %645 = vmatmul.mubr.bf16.gmra.mxu0 %v394
        %v646 = vpop.f32.mrf.mxu0
        %v647 = vadd.f32 0.0, %v646
        %v648 = vpop.f32.mrf.mxu0
        %v649 = vadd.f32 0.0, %v648
        %v650 = vpop.f32.mrf.mxu0
        %v651 = vadd.f32 0.0, %v650
        %v652 = vpop.f32.mrf.mxu0
        %v653 = vadd.f32 0.0, %v652
        %654 = vmatprep.mubr.bf16.mxu0 0
        %655 = vmatmul.mubr.bf16.gmra.mxu0 %v397
        %v656 = vpop.f32.mrf.mxu0
        %v657 = vadd.f32 0.0, %v656
        %v658 = vpop.f32.mrf.mxu0
        %v659 = vadd.f32 0.0, %v658
        %v660 = vpop.f32.mrf.mxu0
        %v661 = vadd.f32 0.0, %v660
        %v662 = vpop.f32.mrf.mxu0
        %v663 = vadd.f32 0.0, %v662
        %664 = vmatprep.mubr.bf16.mxu0 0
        %665 = vmatmul.mubr.bf16.gmra.mxu0 %v400
        %v666 = vpop.f32.mrf.mxu0
        %v667 = vadd.f32 0.0, %v666
        %v668 = vpop.f32.mrf.mxu0
        %v669 = vadd.f32 0.0, %v668
        %v670 = vpop.f32.mrf.mxu0
        %v671 = vadd.f32 0.0, %v670
        %v672 = vpop.f32.mrf.mxu0
        %v673 = vadd.f32 0.0, %v672
        %674 = vmatprep.mubr.bf16.mxu0 0
        %675 = vmatmul.mubr.bf16.gmra.mxu0 %v403
        %v676 = vpop.f32.mrf.mxu0
        %v677 = vadd.f32 0.0, %v676
        %v678 = vpop.f32.mrf.mxu0
        %v679 = vadd.f32 0.0, %v678
        %v680 = vpop.f32.mrf.mxu0
        %v681 = vadd.f32 0.0, %v680
        %v682 = vpop.f32.mrf.mxu0
        %v683 = vadd.f32 0.0, %v682
        %684 = vdwg.mxu0
        %v685 = vmax.f32 %v527, %v529
        %686 = vmax.xlane.f32.xlu0 %v685
        %v687 = vpop.xlane.xlu0 %686
        %v688 = vmax.f32 %v531, %v533
        %689 = vmax.xlane.f32.xlu0 %v688
        %v690 = vpop.xlane.xlu0 %689
        %v691 = vmax.f32 %v537, %v539
        %692 = vmax.xlane.f32.xlu0 %v691
        %v693 = vpop.xlane.xlu0 %692
        %v694 = vmax.f32 %v541, %v543
        %695 = vmax.xlane.f32.xlu0 %v694
        %v696 = vpop.xlane.xlu0 %695
        %v697 = vmax.f32 %v547, %v549
        %698 = vmax.xlane.f32.xlu0 %v697
        %v699 = vpop.xlane.xlu0 %698
        %v700 = vmax.f32 %v551, %v553
        %701 = vmax.xlane.f32.xlu0 %v700
        %v702 = vpop.xlane.xlu0 %701
        %v703 = vmax.f32 %v557, %v559
        %704 = vmax.xlane.f32.xlu0 %v703
        %v705 = vpop.xlane.xlu0 %704
        %v706 = vmax.f32 %v561, %v563
        %707 = vmax.xlane.f32.xlu0 %v706
        %v708 = vpop.xlane.xlu0 %707
        %v709 = vmax.f32 %v567, %v569
        %710 = vmax.xlane.f32.xlu0 %v709
        %v711 = vpop.xlane.xlu0 %710
        %v712 = vmax.f32 %v571, %v573
        %713 = vmax.xlane.f32.xlu0 %v712
        %v714 = vpop.xlane.xlu0 %713
        %v715 = vmax.f32 %v577, %v579
        %716 = vmax.xlane.f32.xlu0 %v715
        %v717 = vpop.xlane.xlu0 %716
        %v718 = vmax.f32 %v581, %v583
        %719 = vmax.xlane.f32.xlu0 %v718
        %v720 = vpop.xlane.xlu0 %719
        %v721 = vmax.f32 %v587, %v589
        %722 = vmax.xlane.f32.xlu0 %v721
        %v723 = vpop.xlane.xlu0 %722
        %v724 = vmax.f32 %v591, %v593
        %725 = vmax.xlane.f32.xlu0 %v724
        %v726 = vpop.xlane.xlu0 %725
        %v727 = vmax.f32 %v597, %v599
        %728 = vmax.xlane.f32.xlu0 %v727
        %v729 = vpop.xlane.xlu0 %728
        %v730 = vmax.f32 %v601, %v603
        %731 = vmax.xlane.f32.xlu0 %v730
        %v732 = vpop.xlane.xlu0 %731
        %v733 = vsub.f32 %v527, %v687
        %v734 = vsub.f32 %v529, %v687
        %v735 = vsub.f32 %v531, %v690
        %v736 = vsub.f32 %v533, %v690
        %v737 = vsub.f32 %v537, %v693
        %v738 = vsub.f32 %v539, %v693
        %v739 = vsub.f32 %v541, %v696
        %v740 = vsub.f32 %v543, %v696
        %v741 = vsub.f32 %v547, %v699
        %v742 = vsub.f32 %v549, %v699
        %v743 = vsub.f32 %v551, %v702
        %v744 = vsub.f32 %v553, %v702
        %v745 = vsub.f32 %v557, %v705
        %v746 = vsub.f32 %v559, %v705
        %v747 = vsub.f32 %v561, %v708
        %v748 = vsub.f32 %v563, %v708
        %v749 = vsub.f32 %v567, %v711
        %v750 = vsub.f32 %v569, %v711
        %v751 = vsub.f32 %v571, %v714
        %v752 = vsub.f32 %v573, %v714
        %v753 = vsub.f32 %v577, %v717
        %v754 = vsub.f32 %v579, %v717
        %v755 = vsub.f32 %v581, %v720
        %v756 = vsub.f32 %v583, %v720
        %v757 = vsub.f32 %v587, %v723
        %v758 = vsub.f32 %v589, %v723
        %v759 = vsub.f32 %v591, %v726
        %v760 = vsub.f32 %v593, %v726
        %v761 = vsub.f32 %v597, %v729
        %v762 = vsub.f32 %v599, %v729
        %v763 = vsub.f32 %v601, %v732
        %v764 = vsub.f32 %v603, %v732
        %v765 = vmul.f32 %v733, 1.442695
        %v766 = vpow.pop %v765
        %v767 = vmul.f32 %v734, 1.442695
        %v768 = vpow.pop %v767
        %v769 = vmul.f32 %v735, 1.442695
        %v770 = vpow.pop %v769
        %v771 = vmul.f32 %v736, 1.442695
        %v772 = vpow.pop %v771
        %v773 = vmul.f32 %v737, 1.442695
        %v774 = vpow.pop %v773
        %v775 = vmul.f32 %v738, 1.442695
        %v776 = vpow.pop %v775
        %v777 = vmul.f32 %v739, 1.442695
        %v778 = vpow.pop %v777
        %v779 = vmul.f32 %v740, 1.442695
        %v780 = vpow.pop %v779
        %v781 = vmul.f32 %v741, 1.442695
        %v782 = vpow.pop %v781
        %v783 = vmul.f32 %v742, 1.442695
        %v784 = vpow.pop %v783
        %v785 = vmul.f32 %v743, 1.442695
        %v786 = vpow.pop %v785
        %v787 = vmul.f32 %v744, 1.442695
        %v788 = vpow.pop %v787
        %v789 = vmul.f32 %v745, 1.442695
        %v790 = vpow.pop %v789
        %v791 = vmul.f32 %v746, 1.442695
        %v792 = vpow.pop %v791
        %v793 = vmul.f32 %v747, 1.442695
        %v794 = vpow.pop %v793
        %v795 = vmul.f32 %v748, 1.442695
        %v796 = vpow.pop %v795
        %v797 = vmul.f32 %v749, 1.442695
        %v798 = vpow.pop %v797
        %v799 = vmul.f32 %v750, 1.442695
        %v800 = vpow.pop %v799
        %v801 = vmul.f32 %v751, 1.442695
        %v802 = vpow.pop %v801
        %v803 = vmul.f32 %v752, 1.442695
        %v804 = vpow.pop %v803
        %v805 = vmul.f32 %v753, 1.442695
        %v806 = vpow.pop %v805
        %v807 = vmul.f32 %v754, 1.442695
        %v808 = vpow.pop %v807
        %v809 = vmul.f32 %v755, 1.442695
        %v810 = vpow.pop %v809
        %v811 = vmul.f32 %v756, 1.442695
        %v812 = vpow.pop %v811
        %v813 = vmul.f32 %v757, 1.442695
        %v814 = vpow.pop %v813
        %v815 = vmul.f32 %v758, 1.442695
        %v816 = vpow.pop %v815
        %v817 = vmul.f32 %v759, 1.442695
        %v818 = vpow.pop %v817
        %v819 = vmul.f32 %v760, 1.442695
        %v820 = vpow.pop %v819
        %v821 = vmul.f32 %v761, 1.442695
        %v822 = vpow.pop %v821
        %v823 = vmul.f32 %v762, 1.442695
        %v824 = vpow.pop %v823
        %v825 = vmul.f32 %v763, 1.442695
        %v826 = vpow.pop %v825
        %v827 = vmul.f32 %v764, 1.442695
        %v828 = vpow.pop %v827
        %v829 = vadd.f32 %v766, %v768
        %830 = vadd.xlane.f32.xlu0 %v829
        %v831 = vpop.xlane.xlu0 %830
        %v832 = vadd.f32 %v770, %v772
        %833 = vadd.xlane.f32.xlu0 %v832
        %v834 = vpop.xlane.xlu0 %833
        %v835 = vadd.f32 %v774, %v776
        %836 = vadd.xlane.f32.xlu0 %v835
        %v837 = vpop.xlane.xlu0 %836
        %v838 = vadd.f32 %v778, %v780
        %839 = vadd.xlane.f32.xlu0 %v838
        %v840 = vpop.xlane.xlu0 %839
        %v841 = vadd.f32 %v782, %v784
        %842 = vadd.xlane.f32.xlu0 %v841
        %v843 = vpop.xlane.xlu0 %842
        %v844 = vadd.f32 %v786, %v788
        %845 = vadd.xlane.f32.xlu0 %v844
        %v846 = vpop.xlane.xlu0 %845
        %v847 = vadd.f32 %v790, %v792
        %848 = vadd.xlane.f32.xlu0 %v847
        %v849 = vpop.xlane.xlu0 %848
        %v850 = vadd.f32 %v794, %v796
        %851 = vadd.xlane.f32.xlu0 %v850
        %v852 = vpop.xlane.xlu0 %851
        %v853 = vadd.f32 %v798, %v800
        %854 = vadd.xlane.f32.xlu0 %v853
        %v855 = vpop.xlane.xlu0 %854
        %v856 = vadd.f32 %v802, %v804
        %857 = vadd.xlane.f32.xlu0 %v856
        %v858 = vpop.xlane.xlu0 %857
        %v859 = vadd.f32 %v806, %v808
        %860 = vadd.xlane.f32.xlu0 %v859
        %v861 = vpop.xlane.xlu0 %860
        %v862 = vadd.f32 %v810, %v812
        %863 = vadd.xlane.f32.xlu0 %v862
        %v864 = vpop.xlane.xlu0 %863
        %v865 = vadd.f32 %v814, %v816
        %866 = vadd.xlane.f32.xlu0 %v865
        %v867 = vpop.xlane.xlu0 %866
        %v868 = vadd.f32 %v818, %v820
        %869 = vadd.xlane.f32.xlu0 %v868
        %v870 = vpop.xlane.xlu0 %869
        %v871 = vadd.f32 %v822, %v824
        %872 = vadd.xlane.f32.xlu0 %v871
        %v873 = vpop.xlane.xlu0 %872
        %v874 = vadd.f32 %v826, %v828
        %875 = vadd.xlane.f32.xlu0 %v874
        %v876 = vpop.xlane.xlu0 %875
        %v877 = vrcp.pop %v831
        %v878 = vrcp.pop %v834
        %v879 = vrcp.pop %v837
        %v880 = vrcp.pop %v840
        %v881 = vrcp.pop %v843
        %v882 = vrcp.pop %v846
        %v883 = vrcp.pop %v849
        %v884 = vrcp.pop %v852
        %v885 = vrcp.pop %v855
        %v886 = vrcp.pop %v858
        %v887 = vrcp.pop %v861
        %v888 = vrcp.pop %v864
        %v889 = vrcp.pop %v867
        %v890 = vrcp.pop %v870
        %v891 = vrcp.pop %v873
        %v892 = vrcp.pop %v876
        %v893 = vpack.c.bf16 %v770, %v766
        %v894 = vpack.c.bf16 %v772, %v768
        %v895 = vpack.c.bf16 %v778, %v774
        %v896 = vpack.c.bf16 %v780, %v776
        %v897 = vpack.c.bf16 %v786, %v782
        %v898 = vpack.c.bf16 %v788, %v784
        %v899 = vpack.c.bf16 %v794, %v790
        %v900 = vpack.c.bf16 %v796, %v792
        %v901 = vpack.c.bf16 %v802, %v798
        %v902 = vpack.c.bf16 %v804, %v800
        %v903 = vpack.c.bf16 %v810, %v806
        %v904 = vpack.c.bf16 %v812, %v808
        %v905 = vpack.c.bf16 %v818, %v814
        %v906 = vpack.c.bf16 %v820, %v816
        %v907 = vpack.c.bf16 %v826, %v822
        %v908 = vpack.c.bf16 %v828, %v824
        %v909 = vpack.c.bf16 %v611, %v607
        %v910 = vpack.c.bf16 %v613, %v609
        %v911 = vpack.c.bf16 %v621, %v617
        %v912 = vpack.c.bf16 %v623, %v619
        %v913 = vpack.c.bf16 %v631, %v627
        %v914 = vpack.c.bf16 %v633, %v629
        %v915 = vpack.c.bf16 %v641, %v637
        %v916 = vpack.c.bf16 %v643, %v639
        %v917 = vpack.c.bf16 %v651, %v647
        %v918 = vpack.c.bf16 %v653, %v649
        %v919 = vpack.c.bf16 %v661, %v657
        %v920 = vpack.c.bf16 %v663, %v659
        %v921 = vpack.c.bf16 %v671, %v667
        %v922 = vpack.c.bf16 %v673, %v669
        %v923 = vpack.c.bf16 %v681, %v677
        %v924 = vpack.c.bf16 %v683, %v679
        %925 = vmatprep.subr.bf16.mxu0 %v924
        %926 = vmatpush1.bf16.xpose.msra.mxu0 %v923
        %927 = vmatprep.subr.bf16.mxu0 %v922
        %928 = vmatpush1.bf16.xpose.msra.mxu0 %v921
        %929 = vmatprep.subr.bf16.mxu0 %v920
        %930 = vmatpush1.bf16.xpose.msra.mxu0 %v919
        %931 = vmatprep.subr.bf16.mxu0 %v918
        %932 = vmatpush1.bf16.xpose.msra.mxu0 %v917
        %933 = vmatprep.subr.bf16.mxu0 %v916
        %934 = vmatpush1.bf16.xpose.msra.mxu0 %v915
        %935 = vmatprep.subr.bf16.mxu0 %v914
        %936 = vmatpush1.bf16.xpose.msra.mxu0 %v913
        %937 = vmatprep.subr.bf16.mxu0 %v912
        %938 = vmatpush1.bf16.xpose.msra.mxu0 %v911
        %939 = vmatprep.subr.bf16.mxu0 %v910
        %940 = vmatpush1.bf16.xpose.msra.mxu0 %v909
        %941 = vmatprep.subr.bf16.mxu0 0
        %942 = vmatpush2.bf16.xpose.msra.mxu0 0
        %943 = vmatprep.subr.bf16.mxu0 0
        %944 = vmatpush2.bf16.xpose.msra.mxu0 0
        %945 = vmatprep.subr.bf16.mxu0 0
        %946 = vmatpush2.bf16.xpose.msra.mxu0 0
        %947 = vmatprep.subr.bf16.mxu0 0
        %948 = vmatpush2.bf16.xpose.msra.mxu0 0
        %949 = vmatprep.subr.bf16.mxu0 0
        %950 = vmatpush2.bf16.xpose.msra.mxu0 0
        %951 = vmatprep.subr.bf16.mxu0 0
        %952 = vmatpush2.bf16.xpose.msra.mxu0 0
        %953 = vmatprep.subr.bf16.mxu0 0
        %954 = vmatpush2.bf16.xpose.msra.mxu0 0
        %955 = vmatprep.subr.bf16.mxu0 0
        %956 = vmatpush2.bf16.xpose.msra.mxu0 0
        %957 = vmatprep.mubr.bf16.mxu0 %v894
        %958 = vmatmul.mubr.bf16.gmra.mxu0 %v893
        %v959 = vpop.f32.mrf.mxu0
        %v960 = vadd.f32 0.0, %v959
        %v961 = vpop.f32.mrf.mxu0
        %v962 = vpop.f32.mrf.mxu0
        %v963 = vadd.f32 0.0, %v962
        %v964 = vpop.f32.mrf.mxu0
        %965 = vmatprep.mubr.bf16.mxu0 %v896
        %966 = vmatmul.mubr.bf16.gmra.mxu0 %v895
        %v967 = vpop.f32.mrf.mxu0
        %v968 = vadd.f32 0.0, %v967
        %v969 = vpop.f32.mrf.mxu0
        %v970 = vpop.f32.mrf.mxu0
        %v971 = vadd.f32 0.0, %v970
        %v972 = vpop.f32.mrf.mxu0
        %973 = vmatprep.mubr.bf16.mxu0 %v898
        %974 = vmatmul.mubr.bf16.gmra.mxu0 %v897
        %v975 = vpop.f32.mrf.mxu0
        %v976 = vadd.f32 0.0, %v975
        %v977 = vpop.f32.mrf.mxu0
        %v978 = vpop.f32.mrf.mxu0
        %v979 = vadd.f32 0.0, %v978
        %v980 = vpop.f32.mrf.mxu0
        %981 = vmatprep.mubr.bf16.mxu0 %v900
        %982 = vmatmul.mubr.bf16.gmra.mxu0 %v899
        %v983 = vpop.f32.mrf.mxu0
        %v984 = vadd.f32 0.0, %v983
        %v985 = vpop.f32.mrf.mxu0
        %v986 = vpop.f32.mrf.mxu0
        %v987 = vadd.f32 0.0, %v986
        %v988 = vpop.f32.mrf.mxu0
        %989 = vmatprep.mubr.bf16.mxu0 %v902
        %990 = vmatmul.mubr.bf16.gmra.mxu0 %v901
        %v991 = vpop.f32.mrf.mxu0
        %v992 = vadd.f32 0.0, %v991
        %v993 = vpop.f32.mrf.mxu0
        %v994 = vpop.f32.mrf.mxu0
        %v995 = vadd.f32 0.0, %v994
        %v996 = vpop.f32.mrf.mxu0
        %997 = vmatprep.mubr.bf16.mxu0 %v904
        %998 = vmatmul.mubr.bf16.gmra.mxu0 %v903
        %v999 = vpop.f32.mrf.mxu0
        %v1000 = vadd.f32 0.0, %v999
        %v1001 = vpop.f32.mrf.mxu0
        %v1002 = vpop.f32.mrf.mxu0
        %v1003 = vadd.f32 0.0, %v1002
        %v1004 = vpop.f32.mrf.mxu0
        %1005 = vmatprep.mubr.bf16.mxu0 %v906
        %1006 = vmatmul.mubr.bf16.gmra.mxu0 %v905
        %v1007 = vpop.f32.mrf.mxu0
        %v1008 = vadd.f32 0.0, %v1007
        %v1009 = vpop.f32.mrf.mxu0
        %v1010 = vpop.f32.mrf.mxu0
        %v1011 = vadd.f32 0.0, %v1010
        %v1012 = vpop.f32.mrf.mxu0
        %1013 = vmatprep.mubr.bf16.mxu0 %v908
        %1014 = vmatmul.mubr.bf16.gmra.mxu0 %v907
        %v1015 = vpop.f32.mrf.mxu0
        %v1016 = vadd.f32 0.0, %v1015
        %v1017 = vpop.f32.mrf.mxu0
        %v1018 = vpop.f32.mrf.mxu0
        %v1019 = vadd.f32 0.0, %v1018
        %v1020 = vpop.f32.mrf.mxu0
        %1021 = vdwg.mxu0
        %v1022 = vmul.f32 %v960, %v877
        %v1023 = vmul.f32 %v963, %v878
        %v1024 = vmul.f32 %v968, %v879
        %v1025 = vmul.f32 %v971, %v880
        %v1026 = vmul.f32 %v976, %v881
        %v1027 = vmul.f32 %v979, %v882
        %v1028 = vmul.f32 %v984, %v883
        %v1029 = vmul.f32 %v987, %v884
        %v1030 = vmul.f32 %v992, %v885
        %v1031 = vmul.f32 %v995, %v886
        %v1032 = vmul.f32 %v1000, %v887
        %v1033 = vmul.f32 %v1003, %v888
        %v1034 = vmul.f32 %v1008, %v889
        %v1035 = vmul.f32 %v1011, %v890
        %v1036 = vmul.f32 %v1016, %v891
        %v1037 = vmul.f32 %v1019, %v892
        %v1038 = vld [vmem:[#allocation5] sm:$0xff]
        %v1039 = vld [vmem:[#allocation5 + $0x8] sm:$0xff]
        %v1040 = vld [vmem:[#allocation5 + $0x10] sm:$0xff]
        %v1041 = vld [vmem:[#allocation5 + $0x18] sm:$0xff]
        %v1042 = vld [vmem:[#allocation5 + $0x20] sm:$0xff]
        %v1043 = vld [vmem:[#allocation5 + $0x28] sm:$0xff]
        %v1044 = vld [vmem:[#allocation5 + $0x30] sm:$0xff]
        %v1045 = vld [vmem:[#allocation5 + $0x38] sm:$0xff]
        %v1046 = vld [vmem:[#allocation5 + $0x40] sm:$0xff]
        %v1047 = vld [vmem:[#allocation5 + $0x48] sm:$0xff]
        %v1048 = vld [vmem:[#allocation5 + $0x50] sm:$0xff]
        %v1049 = vld [vmem:[#allocation5 + $0x58] sm:$0xff]
        %v1050 = vld [vmem:[#allocation5 + $0x60] sm:$0xff]
        %v1051 = vld [vmem:[#allocation5 + $0x68] sm:$0xff]
        %v1052 = vld [vmem:[#allocation5 + $0x70] sm:$0xff]
        %v1053 = vld [vmem:[#allocation5 + $0x78] sm:$0xff]
        %v1054 = vmul.f32 %v1022, %v1038
        %v1055 = vmul.f32 %v1023, %v1039
        %v1056 = vmul.f32 %v1024, %v1040
        %v1057 = vmul.f32 %v1025, %v1041
        %v1058 = vmul.f32 %v1026, %v1042
        %v1059 = vmul.f32 %v1027, %v1043
        %v1060 = vmul.f32 %v1028, %v1044
        %v1061 = vmul.f32 %v1029, %v1045
        %v1062 = vmul.f32 %v1030, %v1046
        %v1063 = vmul.f32 %v1031, %v1047
        %v1064 = vmul.f32 %v1032, %v1048
        %v1065 = vmul.f32 %v1033, %v1049
        %v1066 = vmul.f32 %v1034, %v1050
        %v1067 = vmul.f32 %v1035, %v1051
        %v1068 = vmul.f32 %v1036, %v1052
        %v1069 = vmul.f32 %v1037, %v1053
        %v1070 = vpack.c.bf16 %v1055, %v1054
        %v1071 = vpack.c.bf16 %v1057, %v1056
        %v1072 = vpack.c.bf16 %v1059, %v1058
        %v1073 = vpack.c.bf16 %v1061, %v1060
        %v1074 = vpack.c.bf16 %v1063, %v1062
        %v1075 = vpack.c.bf16 %v1065, %v1064
        %v1076 = vpack.c.bf16 %v1067, %v1066
        %v1077 = vpack.c.bf16 %v1069, %v1068
        %v1078 = vpack.c.bf16 %v451, %v447
        %v1079 = vpack.c.bf16 %v453, %v449
        %v1080 = vpack.c.bf16 %v461, %v457
        %v1081 = vpack.c.bf16 %v463, %v459
        %v1082 = vpack.c.bf16 %v471, %v467
        %v1083 = vpack.c.bf16 %v473, %v469
        %v1084 = vpack.c.bf16 %v481, %v477
        %v1085 = vpack.c.bf16 %v483, %v479
        %v1086 = vpack.c.bf16 %v491, %v487
        %v1087 = vpack.c.bf16 %v493, %v489
        %v1088 = vpack.c.bf16 %v501, %v497
        %v1089 = vpack.c.bf16 %v503, %v499
        %v1090 = vpack.c.bf16 %v511, %v507
        %v1091 = vpack.c.bf16 %v513, %v509
        %v1092 = vpack.c.bf16 %v521, %v517
        %v1093 = vpack.c.bf16 %v523, %v519
        %1094 = vxpose.xlu0.c.b16.start [1/8] %v1070, 128
        %1095 = vxpose.xlu0.c.b16.cont [2/8] %v1071, 128
        %1096 = vxpose.xlu0.c.b16.cont [3/8] %v1072, 128
        %1097 = vxpose.xlu0.c.b16.cont [4/8] %v1073, 128
        %1098 = vxpose.xlu0.c.b16.cont [5/8] %v1074, 128
        %1099 = vxpose.xlu0.c.b16.cont [6/8] %v1075, 128
        %1100 = vxpose.xlu0.c.b16.cont [7/8] %v1076, 128
        %1101 = vxpose.xlu0.c.b16.end [8/8] %v1077, 128
        %v1102 = vpop.trf.xlu0
        %v1103 = vpop.trf.xlu0
        %v1104 = vpop.trf.xlu0
        %v1105 = vpop.trf.xlu0
        %v1106 = vpop.trf.xlu0
        %v1107 = vpop.trf.xlu0
        %v1108 = vpop.trf.xlu0
        %v1109 = vpop.trf.xlu0
        %1110 = vmatprep.subr.bf16.mxu0 %v1093
        %1111 = vmatpush1.bf16.msra.mxu0 %v1092
        %1112 = vmatprep.subr.bf16.mxu0 %v1091
        %1113 = vmatpush1.bf16.msra.mxu0 %v1090
        %1114 = vmatprep.subr.bf16.mxu0 %v1089
        %1115 = vmatpush1.bf16.msra.mxu0 %v1088
        %1116 = vmatprep.subr.bf16.mxu0 %v1087
        %1117 = vmatpush1.bf16.msra.mxu0 %v1086
        %1118 = vmatprep.subr.bf16.mxu0 %v1085
        %1119 = vmatpush1.bf16.msra.mxu0 %v1084
        %1120 = vmatprep.subr.bf16.mxu0 %v1083
        %1121 = vmatpush1.bf16.msra.mxu0 %v1082
        %1122 = vmatprep.subr.bf16.mxu0 %v1081
        %1123 = vmatpush1.bf16.msra.mxu0 %v1080
        %1124 = vmatprep.subr.bf16.mxu0 %v1079
        %1125 = vmatpush1.bf16.msra.mxu0 %v1078
        %1126 = vmatprep.subr.bf16.mxu0 0
        %1127 = vmatpush2.bf16.msra.mxu0 0
        %1128 = vmatprep.subr.bf16.mxu0 0
        %1129 = vmatpush2.bf16.msra.mxu0 0
        %1130 = vmatprep.subr.bf16.mxu0 0
        %1131 = vmatpush2.bf16.msra.mxu0 0
        %1132 = vmatprep.subr.bf16.mxu0 0
        %1133 = vmatpush2.bf16.msra.mxu0 0
        %1134 = vmatprep.subr.bf16.mxu0 0
        %1135 = vmatpush2.bf16.msra.mxu0 0
        %1136 = vmatprep.subr.bf16.mxu0 0
        %1137 = vmatpush2.bf16.msra.mxu0 0
        %1138 = vmatprep.subr.bf16.mxu0 0
        %1139 = vmatpush2.bf16.msra.mxu0 0
        %1140 = vmatprep.subr.bf16.mxu0 0
        %1141 = vmatpush2.bf16.msra.mxu0 0
        %1142 = vmatprep.mubr.bf16.mxu0 0
        %1143 = vmatmul.mubr.bf16.gmra.mxu0 %v1102
        %v1144 = vpop.f32.mrf.mxu0
        %v1145 = vadd.f32 0.0, %v1144
        %v1146 = vpop.f32.mrf.mxu0
        %v1147 = vadd.f32 0.0, %v1146
        %v1148 = vpop.f32.mrf.mxu0
        %v1149 = vadd.f32 0.0, %v1148
        %v1150 = vpop.f32.mrf.mxu0
        %v1151 = vadd.f32 0.0, %v1150
        %1152 = vmatprep.mubr.bf16.mxu0 0
        %1153 = vmatmul.mubr.bf16.gmra.mxu0 %v1103
        %v1154 = vpop.f32.mrf.mxu0
        %v1155 = vadd.f32 0.0, %v1154
        %v1156 = vpop.f32.mrf.mxu0
        %v1157 = vadd.f32 0.0, %v1156
        %v1158 = vpop.f32.mrf.mxu0
        %v1159 = vadd.f32 0.0, %v1158
        %v1160 = vpop.f32.mrf.mxu0
        %v1161 = vadd.f32 0.0, %v1160
        %1162 = vmatprep.mubr.bf16.mxu0 0
        %1163 = vmatmul.mubr.bf16.gmra.mxu0 %v1104
        %v1164 = vpop.f32.mrf.mxu0
        %v1165 = vadd.f32 0.0, %v1164
        %v1166 = vpop.f32.mrf.mxu0
        %v1167 = vadd.f32 0.0, %v1166
        %v1168 = vpop.f32.mrf.mxu0
        %v1169 = vadd.f32 0.0, %v1168
        %v1170 = vpop.f32.mrf.mxu0
        %v1171 = vadd.f32 0.0, %v1170
        %1172 = vmatprep.mubr.bf16.mxu0 0
        %1173 = vmatmul.mubr.bf16.gmra.mxu0 %v1105
        %v1174 = vpop.f32.mrf.mxu0
        %v1175 = vadd.f32 0.0, %v1174
        %v1176 = vpop.f32.mrf.mxu0
        %v1177 = vadd.f32 0.0, %v1176
        %v1178 = vpop.f32.mrf.mxu0
        %v1179 = vadd.f32 0.0, %v1178
        %v1180 = vpop.f32.mrf.mxu0
        %v1181 = vadd.f32 0.0, %v1180
        %1182 = vmatprep.mubr.bf16.mxu0 0
        %1183 = vmatmul.mubr.bf16.gmra.mxu0 %v1106
        %v1184 = vpop.f32.mrf.mxu0
        %v1185 = vadd.f32 0.0, %v1184
        %v1186 = vpop.f32.mrf.mxu0
        %v1187 = vadd.f32 0.0, %v1186
        %v1188 = vpop.f32.mrf.mxu0
        %v1189 = vadd.f32 0.0, %v1188
        %v1190 = vpop.f32.mrf.mxu0
        %v1191 = vadd.f32 0.0, %v1190
        %1192 = vmatprep.mubr.bf16.mxu0 0
        %1193 = vmatmul.mubr.bf16.gmra.mxu0 %v1107
        %v1194 = vpop.f32.mrf.mxu0
        %v1195 = vadd.f32 0.0, %v1194
        %v1196 = vpop.f32.mrf.mxu0
        %v1197 = vadd.f32 0.0, %v1196
        %v1198 = vpop.f32.mrf.mxu0
        %v1199 = vadd.f32 0.0, %v1198
        %v1200 = vpop.f32.mrf.mxu0
        %v1201 = vadd.f32 0.0, %v1200
        %1202 = vmatprep.mubr.bf16.mxu0 0
        %1203 = vmatmul.mubr.bf16.gmra.mxu0 %v1108
        %v1204 = vpop.f32.mrf.mxu0
        %v1205 = vadd.f32 0.0, %v1204
        %v1206 = vpop.f32.mrf.mxu0
        %v1207 = vadd.f32 0.0, %v1206
        %v1208 = vpop.f32.mrf.mxu0
        %v1209 = vadd.f32 0.0, %v1208
        %v1210 = vpop.f32.mrf.mxu0
        %v1211 = vadd.f32 0.0, %v1210
        %1212 = vmatprep.mubr.bf16.mxu0 0
        %1213 = vmatmul.mubr.bf16.gmra.mxu0 %v1109
        %v1214 = vpop.f32.mrf.mxu0
        %v1215 = vadd.f32 0.0, %v1214
        %v1216 = vpop.f32.mrf.mxu0
        %v1217 = vadd.f32 0.0, %v1216
        %v1218 = vpop.f32.mrf.mxu0
        %v1219 = vadd.f32 0.0, %v1218
        %v1220 = vpop.f32.mrf.mxu0
        %v1221 = vadd.f32 0.0, %v1220
        %1222 = vdwg.mxu0
        %v1223 = vld [vmem:[%s2] sm:$0x3]
        %v1224 = vpack.c.bf16 %v1149, %v1145
        %v1225 = vpack.c.bf16 %v1151, %v1147
        %v1226 = vpack.c.bf16 %v1159, %v1155
        %v1227 = vpack.c.bf16 %v1161, %v1157
        %v1228 = vpack.c.bf16 %v1169, %v1165
        %v1229 = vpack.c.bf16 %v1171, %v1167
        %v1230 = vpack.c.bf16 %v1179, %v1175
        %v1231 = vpack.c.bf16 %v1181, %v1177
        %v1232 = vpack.c.bf16 %v1189, %v1185
        %v1233 = vpack.c.bf16 %v1191, %v1187
        %v1234 = vpack.c.bf16 %v1199, %v1195
        %v1235 = vpack.c.bf16 %v1201, %v1197
        %v1236 = vpack.c.bf16 %v1209, %v1205
        %v1237 = vpack.c.bf16 %v1211, %v1207
        %v1238 = vpack.c.bf16 %v1219, %v1215
        %v1239 = vpack.c.bf16 %v1221, %v1217
        %v1240 = vld [vmem:[%s3] sm:$0xf]
        %1242 = vset.pattern.permute.xlu0 0
        %1243 = vperm.xlu0 %1242, %v1240
        %v1244 = vpop.permute.xlu0 %1243
        %1246 = vmatprep.subr.bf16.mxu0 %v1239
        %1247 = vmatpush1.bf16.msra.mxu0 %v1238
        %1248 = vmatprep.subr.bf16.mxu0 %v1237
        %1249 = vmatpush1.bf16.msra.mxu0 %v1236
        %1250 = vmatprep.subr.bf16.mxu0 %v1235
        %1251 = vmatpush1.bf16.msra.mxu0 %v1234
        %1252 = vmatprep.subr.bf16.mxu0 %v1233
        %1253 = vmatpush1.bf16.msra.mxu0 %v1232
        %1254 = vmatprep.subr.bf16.mxu0 %v1231
        %1255 = vmatpush1.bf16.msra.mxu0 %v1230
        %1256 = vmatprep.subr.bf16.mxu0 %v1229
        %1257 = vmatpush1.bf16.msra.mxu0 %v1228
        %1258 = vmatprep.subr.bf16.mxu0 %v1227
        %1259 = vmatpush1.bf16.msra.mxu0 %v1226
        %1260 = vmatprep.subr.bf16.mxu0 %v1225
        %1261 = vmatpush1.bf16.msra.mxu0 %v1224
        %1262 = vmatprep.subr.bf16.mxu0 0
        %1263 = vmatpush2.bf16.msra.mxu0 0
        %1264 = vmatprep.subr.bf16.mxu0 0
        %1265 = vmatpush2.bf16.msra.mxu0 0
        %1266 = vmatprep.subr.bf16.mxu0 0
        %1267 = vmatpush2.bf16.msra.mxu0 0
        %1268 = vmatprep.subr.bf16.mxu0 0
        %1269 = vmatpush2.bf16.msra.mxu0 0
        %1270 = vmatprep.subr.bf16.mxu0 0
        %1271 = vmatpush2.bf16.msra.mxu0 0
        %1272 = vmatprep.subr.bf16.mxu0 0
        %1273 = vmatpush2.bf16.msra.mxu0 0
        %1274 = vmatprep.subr.bf16.mxu0 0
        %1275 = vmatpush2.bf16.msra.mxu0 0
        %1276 = vmatprep.subr.bf16.mxu0 0
        %1277 = vmatpush2.bf16.msra.mxu0 0
        %1278 = vmatprep.mubr.bf16.mxu0 0
        %1279 = vmatmul.mubr.bf16.gmra.mxu0 %v1223
        %v1280 = vpop.f32.mrf.mxu0
        %v1281 = vadd.f32 %v1244, %v1280
        %v1282 = vpop.f32.mrf.mxu0
        %v1283 = vadd.f32 %v1244, %v1282
        %v1284 = vpop.f32.mrf.mxu0
        %v1285 = vpop.f32.mrf.mxu0
        %1286 = vdwg.mxu0
        %v1287 = vadd.f32 %v1281, %v257
        %v1288 = vadd.f32 %v1283, %v260
        %v1291 = vcombine.low %v1287, %v1288
        %1293 = vst [vmem:[%s255] sm:$0xff] %v1291
        %s1294 = sand.u32 %s141, 1
        %s1295 = scalar_lea.sflag [#allocation4], %s1294
        %s1296 = sand.u32 %s141, 1
        %s1297 = smul.addr %s1296, 8
        %s1298 = scalar_lea.vmem [#allocation7], %s1297
        // Predicated region
        $region49: #{tpu_custom_call.1} parent=39 // pred_check
          %p1299 = pneg %p151
        $region50: #{tpu_custom_call.1} parent=39 // pred_check_branch
          %1301 = sbr.rel (%p1299) target = $region52
        $region51: #{tpu_custom_call.1} parent=39 // pred_region
          %s1303 = ssub.s32 128, 128
          %1304 = vsyncadd %s1295, %s1303
          %s1305 = smul.addr %s23, 2
          %s1306 = smul.addr %s1305, 64
          %s1307 = scalar_lea.hbm %s5, %s1306
          %s1309 = sshll.u32 %s1298, 4
          %s1310 = int_to_ptr.vmem [resolvable:$true] %s1309
          %1312 = dma.vmem_to_hbm [thread:$0]  %s1310, 128, %s1307, %s1295
        $region52: #{tpu_custom_call.1} parent=39 // pred_fallthru
          _
      $region40: #{tpu_custom_call.1} parent=5 // pred_fallthru
        _
      %p1313 = scmp.le.s32.totalorder 2, %s18
      // Predicated region
      $region53: #{tpu_custom_call.1} parent=5 // pred_check
        %p1314 = pneg %p1313
      $region54: #{tpu_custom_call.1} parent=5 // pred_check_branch
        %1316 = sbr.rel (%p1314) target = $region56
      $region55: #{tpu_custom_call.1} parent=5 // pred_region
        %s1317 = ssub.s32 %s18, 2
        // Predicated region
        $region57: #{tpu_custom_call.1} parent=55 // pred_check
          %p1318 = pneg %p157
        $region58: #{tpu_custom_call.1} parent=55 // pred_check_branch
          %1320 = sbr.rel (%p1318) target = $region60
        $region59: #{tpu_custom_call.1} parent=55 // pred_region
          %s1321 = sand.u32 %s142, 1
          %s1322 = scalar_lea.sflag [#allocation4], %s1321
          %s1323 = sand.u32 %s142, 1
          %s1324 = smul.addr %s1323, 8
          %s1325 = scalar_lea.vmem [#allocation7], %s1324
          %1326 = dma.done %s1322, 128
        $region60: #{tpu_custom_call.1} parent=55 // pred_fallthru
          _
      $region56: #{tpu_custom_call.1} parent=5 // pred_fallthru
        _
    $region6: #{tpu_custom_call.1} parent=1 // loop_footer
      %s22 = sadd.s32 1, %s18
    $region7: #{tpu_custom_call.1} parent=1 // loop_footer_branch
      %17 = sbr.rel target = $region3
    $region8: #{tpu_custom_call.1} parent=1 // loop_exit
      _
    %1327 = vsyncpa [#allocation3], 1
    %s1328 = scalar_lea.sflag [#allocation3], 1
    %1329 = vsyncpa %s1328, 1
    %1330 = vsyncpa [#allocation6], 1
    %1331 = vsyncpa [#allocation4], 1
    %s1332 = scalar_lea.sflag [#allocation4], 1
    %1333 = vsyncpa %s1332, 1

</llo_original>
